<compile_context>
chip_gen: v5e
topology: v5e:2x2
jax: 0.10.0
libtpu: 0.0.40
codegen_flags: <defaults>
</compile_context>

<pallas_src>
import functools
import math

import jax
import jax.numpy as jnp
from jax.experimental import pallas as pl
from jax.experimental.pallas import tpu as pltpu


def _rmsnorm_kernel(x_ref, w_ref, o_ref, *, eps, inv_d):
    # x_ref: (block_rows, d_model)  w_ref: (1, d_model)  o_ref: (block_rows, d_model)
    # Cast the block to f32 ONCE and reuse it for both the reduction and the
    # scale pass (do not rely on Mosaic CSE-ing two x_ref[...] reads).
    x32 = x_ref[...].astype(jnp.float32)
    ms = jnp.sum(x32 * x32, axis=-1, keepdims=True) * inv_d    # (block_rows, 1)
    inv = jax.lax.rsqrt(ms + eps)                              # EUP slot, ~free
    w = w_ref[...].astype(jnp.float32)                         # (1, d_model)
    o_ref[...] = (x32 * inv * w).astype(o_ref.dtype)


def _tpu_vmem_limit_bytes() -> int:
    """VMEM budget for this generation: <= 48 MiB, <= 75% of physical VMEM."""
    phys = 64 << 20  # conservative default (v7x has the smallest VMEM: 64 MiB)
    try:
        info = pltpu.get_tpu_info()
        v = getattr(info, "vmem_capacity_bytes", None)
        if isinstance(v, int) and v > 0:
            phys = v
    except Exception:
        pass
    return min(48 << 20, (phys * 3) // 4)


def _num_tensorcores() -> int:
    """TensorCores per chip (v5e/v6e: 1, v7x: 2). Falls back to 1."""
    try:
        info = pltpu.get_tpu_info()
        for attr in ("num_cores", "tensorcore_count", "num_tensorcores", "cores_per_chip"):
            v = getattr(info, attr, None)
            if isinstance(v, int) and v > 0:
                return v
    except Exception:
        pass
    try:
        v = getattr(jax.devices()[0], "num_cores", None)
        if isinstance(v, int) and v > 0:
            return v
    except Exception:
        pass
    return 1


def _choose_block_rows(rows: int, d_model: int, in_itemsize: int, out_itemsize: int,
                       num_cores: int, vmem_limit_bytes: int) -> int:
    """Dtype- and generation-aware row-block size.

    Footprint per block row: 2x input buffer (double-buffered) + 2x output
    buffer (double-buffered) + one f32 temporary, plus a little slack for the
    (block_rows, 1) reduction temporaries.
    """
    per_row = d_model * (2 * in_itemsize + 2 * out_itemsize + 4) + 16
    budget = vmem_limit_bytes // 2      # leave headroom for compiler temps/spills
    br = budget // per_row
    br = max(8, (br // 8) * 8)          # sublane multiple

    rows8 = ((rows + 7) // 8) * 8
    br = min(br, rows8)                 # never larger than the whole problem

    if num_cores > 1 and rows > 8:
        # v7x: give each TensorCore work and keep some intra-core pipelining.
        max_steps = pl.cdiv(rows, 8)
        min_steps = min(2 * num_cores, max_steps)
        cap = ((pl.cdiv(rows, min_steps) + 7) // 8) * 8
        br = min(br, max(8, cap))
        # Prefer an even step count so the two TCs stay balanced.
        steps = pl.cdiv(rows, br)
        while steps > 1 and steps % 2 == 1 and br > 8:
            br -= 8
            steps = pl.cdiv(rows, br)
    # Single-TC chips (v5e/v6e): no forced split — one large block when it fits.
    return br


def rmsnorm(x, weight, eps: float = 1e-5):
    """RMSNorm over the last axis. x: (..., d_model), weight: (d_model,)."""
    orig_shape = x.shape
    d_model = orig_shape[-1]
    rows = math.prod(orig_shape[:-1]) if len(orig_shape) > 1 else 1

    x2d = x.reshape(rows, d_model)
    w2d = weight.reshape(1, d_model)

    vmem_limit = _tpu_vmem_limit_bytes()
    num_cores = _num_tensorcores()
    block_rows = _choose_block_rows(
        rows, d_model,
        in_itemsize=jnp.dtype(x.dtype).itemsize,
        out_itemsize=jnp.dtype(x.dtype).itemsize,
        num_cores=num_cores,
        vmem_limit_bytes=vmem_limit,
    )
    grid = (pl.cdiv(rows, block_rows),)  # ragged last block handled by Pallas masking

    # Note: for production shapes d_model is a multiple of 128 -> lane-dense,
    # unmasked stores. Smaller d_model still works but wastes lanes/store slots.
    out = pl.pallas_call(
        functools.partial(_rmsnorm_kernel, eps=eps, inv_d=1.0 / d_model),
        out_shape=jax.ShapeDtypeStruct((rows, d_model), x.dtype),
        grid_spec=pltpu.PrefetchScalarGridSpec(
            num_scalar_prefetch=0,
            grid=grid,
            in_specs=[
                pl.BlockSpec((block_rows, d_model), lambda i: (i, 0)),
                pl.BlockSpec((1, d_model), lambda i: (0, 0)),  # weight: fetched once
            ],
            out_specs=pl.BlockSpec((block_rows, d_model), lambda i: (i, 0)),
        ),
        compiler_params=pltpu.CompilerParams(
            dimension_semantics=("parallel",),
            vmem_limit_bytes=vmem_limit,
        ),
    )(x2d, w2d)

    return out.reshape(orig_shape)


def _ref_rmsnorm(x, weight, eps):
    x32 = x.astype(jnp.float32)
    out = x32 * jax.lax.rsqrt(jnp.mean(x32 * x32, axis=-1, keepdims=True) + eps)
    return (out * weight.astype(jnp.float32)).astype(x.dtype)


if __name__ == "__main__":
    key = jax.random.PRNGKey(0)
    eps = 1e-5

    # Case 1: shapes consistent with the module (batch=2, seq=8, d_model=32),
    # weight = ones (matches nn.Parameter(torch.ones(d_model)) init).
    batch, seq, d_model = 2, 8, 32
    x = jax.random.normal(key, (batch, seq, d_model), dtype=jnp.float32)
    weight = jnp.ones((d_model,), dtype=jnp.float32)

    out = jax.block_until_ready(rmsnorm(x, weight, eps=eps))
    ref = _ref_rmsnorm(x, weight, eps)
    assert out.shape == x.shape
    assert jnp.allclose(out, ref, atol=1e-5, rtol=1e-5)

    # Case 2: ragged row count (rows=15, not a multiple of the 8-row sublane
    # block) and a non-trivial weight, exercising the masked tail block.
    k1, k2 = jax.random.split(key)
    x2 = jax.random.normal(k1, (3, 5, d_model), dtype=jnp.float32)
    w2 = jax.random.normal(k2, (d_model,), dtype=jnp.float32)
    out2 = jax.block_until_ready(rmsnorm(x2, w2, eps=eps))
    ref2 = _ref_rmsnorm(x2, w2, eps)
    assert out2.shape == x2.shape
    assert jnp.allclose(out2, ref2, atol=1e-5, rtol=1e-5)

    # Case 3: bf16 input with lane-dense d_model=128 (dtype-aware block sizing,
    # f32 accumulation, single downcast on store).
    k3, k4 = jax.random.split(k1)
    x3 = jax.random.normal(k3, (2, 8, 128), dtype=jnp.bfloat16)
    w3 = (1.0 + 0.1 * jax.random.normal(k4, (128,), dtype=jnp.float32)).astype(jnp.bfloat16)
    out3 = jax.block_until_ready(rmsnorm(x3, w3, eps=eps))
    ref3 = _ref_rmsnorm(x3, w3, eps)
    assert out3.shape == x3.shape
    assert jnp.allclose(out3.astype(jnp.float32), ref3.astype(jnp.float32),
                        atol=2e-2, rtol=2e-2)

    print("KERNEL_OK")
</pallas_src>

<mosaic_0001>
module attributes {stable_mosaic.version = 11 : i64} {
  func.func @_rmsnorm_kernel(%arg0: i32, %arg1: memref<16x32xf32, #tpu.memory_space<vmem>>, %arg2: memref<1x32xf32, #tpu.memory_space<vmem>>, %arg3: memref<16x32xf32, #tpu.memory_space<vmem>>) attributes {dimension_semantics = [#tpu.dimension_semantics<parallel>], iteration_bounds = array<i64: 1>, scalar_prefetch = 0 : i64, scratch_operands = 0 : i64, tpu.core_type = #tpu.core_type<tc>, window_params = [{transform_indices = @transform_0, window_bounds = array<i64: 16, 32>}, {pipeline_mode = #tpu.pipeline_mode<synchronous>, transform_indices = @transform_1, window_bounds = array<i64: 1, 32>}, {transform_indices = @transform_2, window_bounds = array<i64: 16, 32>}]} {
    %c0 = arith.constant 0 : index
    %c0_0 = arith.constant 0 : index
    %0 = vector.load %arg1[%c0, %c0_0] : memref<16x32xf32, #tpu.memory_space<vmem>>, vector<16x32xf32>
    %1 = arith.mulf %0, %0 : vector<16x32xf32>
    %cst = arith.constant dense<0.000000e+00> : vector<16xf32>
    %2 = vector.multi_reduction <add>, %1, %cst [1] : vector<16x32xf32> to vector<16xf32>
    %3 = vector.shape_cast %2 : vector<16xf32> to vector<16x1xf32>
    %cst_1 = arith.constant 3.125000e-02 : f32
    %4 = vector.broadcast %cst_1 : f32 to vector<16x1xf32>
    %5 = arith.mulf %3, %4 : vector<16x1xf32>
    %cst_2 = arith.constant 9.99999974E-6 : f32
    %6 = vector.broadcast %cst_2 : f32 to vector<16x1xf32>
    %7 = arith.addf %5, %6 : vector<16x1xf32>
    %8 = math.rsqrt %7 : vector<16x1xf32>
    %c0_3 = arith.constant 0 : index
    %c0_4 = arith.constant 0 : index
    %9 = vector.load %arg2[%c0_3, %c0_4] : memref<1x32xf32, #tpu.memory_space<vmem>>, vector<1x32xf32>
    %10 = vector.broadcast %8 : vector<16x1xf32> to vector<16x32xf32>
    %11 = arith.mulf %0, %10 : vector<16x32xf32>
    %12 = vector.broadcast %9 : vector<1x32xf32> to vector<16x32xf32>
    %13 = arith.mulf %11, %12 : vector<16x32xf32>
    %c0_5 = arith.constant 0 : index
    %c0_6 = arith.constant 0 : index
    %14 = vector.load %arg3[%c0_5, %c0_6] : memref<16x32xf32, #tpu.memory_space<vmem>>, vector<16x32xf32>
    tpu.vector_store %arg3[%c0_5, %c0_6], %13 {strides = array<i32>} : memref<16x32xf32, #tpu.memory_space<vmem>>, vector<16x32xf32>,
    return
  }
  func.func @transform_0(%arg0: i32) -> (i32, i32) {
    %c0_i32 = arith.constant 0 : i32
    %c0_i32_0 = arith.constant 0 : i32
    return %arg0, %c0_i32 : i32, i32
  }
  func.func @transform_1(%arg0: i32) -> (i32, i32) {
    %c0_i32 = arith.constant 0 : i32
    %c0_i32_0 = arith.constant 0 : i32
    %c0_i32_1 = arith.constant 0 : i32
    return %c0_i32, %c0_i32_0 : i32, i32
  }
  func.func @transform_2(%arg0: i32) -> (i32, i32) {
    %c0_i32 = arith.constant 0 : i32
    %c0_i32_0 = arith.constant 0 : i32
    return %arg0, %c0_i32 : i32, i32
  }
}

</mosaic_0001>

<llo_original>
// kernel: tpu_custom_call.1
$region0: #{tpu_custom_call.1}
  #allocation0 [shape = 'u32[]', space=smem, size = 0x4, offset = 0x4, fixed_abs, tag = 'smem constant byte address 0x4 - core index']
  #allocation1 [shape = 'u32[72,128]{1,0:T(1,128)}', space=vmem, size = 0x9000, scoped, tag = 'internal scratch']
  %s0 = inlined_call_operand.hbm [shape: f32[16,32], index: 0, kind: input, shape index: {}]
  %s1 = inlined_call_operand.hbm [shape: f32[1,32], index: 1, kind: input, shape index: {}]
  %s2 = inlined_call_operand.hbm [shape: f32[16,32], index: 2, kind: output, shape index: {}]
  %s3 = sld [smem:[#allocation0]]
  $region26: #{tpu_custom_call.1} parent=0
    _
  %s5 = ssub.s32 1, %s3
  %s6 = scalar_select 0, %s5, %s3
  $region1: #{tpu_custom_call.1} parent=0
    #allocation2 [shape = 'u8[8192]{0}', space=vmem, size = 0x2000, scoped, tag = 'input window, operand 0, single buffered']
    #allocation3 [shape = 's32[1]{0}', space=sflag, size = 0x4, scoped, tag = 'scoped memory for tpu_custom_call.1']
    #allocation4 [shape = 's32[1]{0}', space=sflag, size = 0x4, scoped, tag = 'scoped memory for tpu_custom_call.1']
    #allocation5 [shape = 'u8[512]{0}', space=vmem, size = 0x400, scoped, tag = 'input window, operand 1, single buffered']
    #allocation6 [shape = 's32[1]{0}', space=sflag, size = 0x4, scoped, tag = 'scoped memory for tpu_custom_call.1']
    #allocation7 [shape = 'u8[8192]{0}', space=vmem, size = 0x2000, scoped, tag = 'output window, operand 0, single buffered']
    %7 = vsyncpa [#allocation3], 0
    %8 = vsyncpa [#allocation6], 0
    %9 = vsyncpa [#allocation4], 0
    // Predicated region
    $region2: #{tpu_custom_call.1} parent=1 // pred_check
      _
    $region3: #{tpu_custom_call.1} parent=1 // pred_check_branch
      %11 = sbr.rel (0) target = $region5
    $region4: #{tpu_custom_call.1} parent=1 // pred_region
      %13 = vsyncadd [#allocation3], 0
      %s14 = sshll.u32 %s0, 4
      %s15 = int_to_ptr.hbm [resolvable:$true] %s14
      %s16 = sshll.u32 [#allocation2], 4
      %s17 = int_to_ptr.vmem [resolvable:$true] %s16
      %22 = dma.hbm_to_vmem [thread:$0]  %s15, 256, %s17, [#allocation3], 128, 128, 8
    $region5: #{tpu_custom_call.1} parent=1 // pred_fallthru
      _
    // Predicated region
    $region6: #{tpu_custom_call.1} parent=1 // pred_check
      _
    $region7: #{tpu_custom_call.1} parent=1 // pred_check_branch
      %24 = sbr.rel (0) target = $region9
    $region8: #{tpu_custom_call.1} parent=1 // pred_region
      %26 = vsyncadd [#allocation6], 0
      %s28 = sshll.u32 %s1, 4
      %s29 = int_to_ptr.hbm [resolvable:$true] %s28
      %s30 = sshll.u32 [#allocation5], 4
      %s31 = int_to_ptr.vmem [resolvable:$true] %s30
      %33 = dma.hbm_to_vmem [thread:$0]  %s29, 16, %s31, [#allocation6]
    $region9: #{tpu_custom_call.1} parent=1 // pred_fallthru
      _
    // Predicated region
    $region10: #{tpu_custom_call.1} parent=1 // pred_check
      _
    $region11: #{tpu_custom_call.1} parent=1 // pred_check_branch
      %35 = sbr.rel (0) target = $region13
    $region12: #{tpu_custom_call.1} parent=1 // pred_region
      %37 = dma.done [#allocation3], 256
    $region13: #{tpu_custom_call.1} parent=1 // pred_fallthru
      _
    // Predicated region
    $region14: #{tpu_custom_call.1} parent=1 // pred_check
      _
    $region15: #{tpu_custom_call.1} parent=1 // pred_check_branch
      %39 = sbr.rel (0) target = $region17
    $region16: #{tpu_custom_call.1} parent=1 // pred_region
      %41 = dma.done [#allocation6], 16
    $region17: #{tpu_custom_call.1} parent=1 // pred_fallthru
      _
    %v42 = vld [vmem:[#allocation2] sm:$0xff]
    %v43 = vld [vmem:[#allocation2 + $0x8] sm:$0xff]
    %v44 = vmul.f32 %v42, %v42
    %v45 = vmul.f32 %v43, %v43
    %vm46 = vcmask 261120
    %v47 = vsel %vm46, %v44, 0.0
    %48 = vadd.xlane.f32.xlu0 %v47
    %v49 = vpop.xlane.xlu0 %48
    %v50 = vsel %vm46, %v45, 0.0
    %51 = vadd.xlane.f32.xlu0 %v50
    %v52 = vpop.xlane.xlu0 %51
    %v53 = vmul.f32 %v49, 0.03125
    %v54 = vmul.f32 %v52, 0.03125
    %v55 = vadd.f32 %v53, 1e-05
    %v56 = vadd.f32 %v54, 1e-05
    %v57 = vrsqrt.pop %v55
    %v58 = vmul.f32 %v57, %v55
    %v59 = vmul.f32 %v58, %v57
    %v60 = vmul.f32 0.5, %v59
    %v61 = vsub.f32 1.5, %v60
    %v62 = vmul.f32 %v57, %v61
    %vm63 = vweird.f32 %v55
    %vm64 = vweird.f32 %v57
    %vm65 = vmor %vm63, %vm64
    %v66 = vsel %vm65, %v57, %v62
    %v67 = vrsqrt.pop %v56
    %v68 = vmul.f32 %v67, %v56
    %v69 = vmul.f32 %v68, %v67
    %v70 = vmul.f32 0.5, %v69
    %v71 = vsub.f32 1.5, %v70
    %v72 = vmul.f32 %v67, %v71
    %vm73 = vweird.f32 %v56
    %vm74 = vweird.f32 %v67
    %vm75 = vmor %vm73, %vm74
    %v76 = vsel %vm75, %v67, %v72
    %v77 = vld [vmem:[#allocation5] sm:$0x1]
    %v78 = vmul.f32 %v42, %v66
    %v79 = vmul.f32 %v43, %v76
    %v81 = vperm.slane %v77, 0
    %v83 = vmul.f32 %v78, %v81
    %v84 = vmul.f32 %v79, %v81
    %85 = vst.msk [vmem:[#allocation7] sm:$0xff] %vm46, %v83
    %86 = vst.msk [vmem:[#allocation7 + $0x8] sm:$0xff] %vm46, %v84
    // Predicated region
    $region18: #{tpu_custom_call.1} parent=1 // pred_check
      _
    $region19: #{tpu_custom_call.1} parent=1 // pred_check_branch
      %88 = sbr.rel (0) target = $region21
    $region20: #{tpu_custom_call.1} parent=1 // pred_region
      %90 = vsyncadd [#allocation4], 0
      %s91 = sshll.u32 [#allocation7], 4
      %s92 = int_to_ptr.vmem [resolvable:$true] %s91
      %s93 = sshll.u32 %s2, 4
      %s94 = int_to_ptr.hbm [resolvable:$true] %s93
      %99 = dma.vmem_to_hbm [thread:$0]  %s92, 256, %s94, [#allocation4], 128, 128, 8
    $region21: #{tpu_custom_call.1} parent=1 // pred_fallthru
      _
    // Predicated region
    $region22: #{tpu_custom_call.1} parent=1 // pred_check
      _
    $region23: #{tpu_custom_call.1} parent=1 // pred_check_branch
      %101 = sbr.rel (0) target = $region25
    $region24: #{tpu_custom_call.1} parent=1 // pred_region
      %103 = dma.done [#allocation4], 256
    $region25: #{tpu_custom_call.1} parent=1 // pred_fallthru
      _
    %104 = vsyncpa [#allocation3], 1
    %105 = vsyncpa [#allocation6], 1
    %106 = vsyncpa [#allocation4], 1

</llo_original>
